<compile_context>
chip_gen: v7x
topology: tpu7x:2x2x1
jax: 0.10.0
libtpu: 0.0.40
codegen_flags: <defaults>
</compile_context>

<pallas_src>
import jax
import jax.numpy as jnp
from jax.experimental import pallas as pl
from jax.experimental.pallas import tpu as pltpu

_SQRT_HALF = 0.7071067811865476  # 1/sqrt(2): folds the 0.5 of the RBF exponent into the scale


def _round_up(x, m):
    return ((x + m - 1) // m) * m


def _pick_tile(size_aligned, unit, cap):
    """Largest multiple of `unit` that divides `size_aligned` and is <= cap.

    Using a divisor of the (already unit-aligned) dim keeps the grid exact, so the only
    padded/writeback-then-sliced bytes are the minimal alignment padding (<= unit-1 rows/cols).
    """
    n_units = size_aligned // unit
    cap_units = max(1, cap // unit)
    best = 1
    for d in range(1, cap_units + 1):
        if n_units % d == 0:
            best = d
    return best * unit


def _as_batched(x):
    if x.ndim == 2:
        return x[None], True
    return x, False


# ----------------------------------------------------------------------------
# Fused Pallas covariance kernel (hot path)
# ----------------------------------------------------------------------------
def fused_rbf_covar(x1_parts, x2_parts, combine, out_dtype=jnp.float32):
    """Covariance of one or more RBF sub-kernels, combined in-register.

    x1_parts / x2_parts: lists of already lengthscale-scaled features,
        each (B, N, Dk) / (B, M, Dk) with scale = exp(-log_ls)/sqrt(2).
    combine: "add" (AdditiveKernel / single kernel) or "mul" (ProductKernel).
    Returns (B, N, M) out_dtype:  combine_k  exp(-||x1_k - x2_k||^2).
    """
    B, N, _ = x1_parts[0].shape
    M = x2_parts[0].shape[1]

    if combine == "mul":
        # prod_k exp(-d_k) == exp(-sum_k d_k): a single matmul over the concatenated
        # feature dim plus a single exp per output element suffices.
        x1_parts = [jnp.concatenate(x1_parts, axis=-1)]
        x2_parts = [jnp.concatenate(x2_parts, axis=-1)]

    # Augmented features fold the norm terms into the MXU:
    #   dot([x1, n1, 1], [2*x2; -1; -n2]) = 2*x1.x2 - n1 - n2 = -||x1 - x2||^2
    x1_aug, x2_aug_t = [], []
    for p1, p2 in zip(x1_parts, x2_parts):
        p1 = p1.astype(jnp.float32)
        p2 = p2.astype(jnp.float32)
        n1 = jnp.sum(p1 * p1, axis=-1, keepdims=True)                      # (B, N, 1)
        n2 = jnp.sum(p2 * p2, axis=-1, keepdims=True)                      # (B, M, 1)
        a1 = jnp.concatenate([p1, n1, jnp.ones_like(n1)], axis=-1)         # (B, N, Dk+2)
        a2 = jnp.concatenate([2.0 * p2, -jnp.ones_like(n2), -n2], axis=-1)  # (B, M, Dk+2)
        x1_aug.append(a1)
        x2_aug_t.append(jnp.swapaxes(a2, -1, -2))                          # (B, Dk+2, M)

    num_segs = len(x1_aug)

    # Minimal (8,128) alignment padding + divisor tiles -> near-zero padded writeback.
    Np = _round_up(N, 8)
    Mp = _round_up(M, 128)
    TN = _pick_tile(Np, 8, 512)
    TM = _pick_tile(Mp, 128, 1024)
    if Np != N:
        x1_aug = [jnp.pad(a, ((0, 0), (0, Np - N), (0, 0))) for a in x1_aug]
    if Mp != M:
        x2_aug_t = [jnp.pad(a, ((0, 0), (0, 0), (0, Mp - M))) for a in x2_aug_t]

    grid = (B, Np // TN, Mp // TM)

    def body(*refs):
        o_ref = refs[-1]
        acc = None
        for k in range(num_segs):
            x1t = refs[k][0]                 # (TN, Dk+2)   lengthscale-scaled + augmented
            x2t = refs[num_segs + k][0]      # (Dk+2, TM)   lane-dense in M, contraction on sublanes
            # MXU: contraction dim 1 (x1) vs dim 0 (x2) -> no in-kernel transpose.
            neg_sqd = jax.lax.dot_general(
                x1t, x2t, (((1,), (0,)), ((), ())),
                preferred_element_type=jnp.float32)                        # = -||x1-x2||^2
            neg_sqd = jnp.minimum(neg_sqd, 0.0)   # clamp tiny positive cancellation error
            t = jnp.exp(neg_sqd)
            acc = t if acc is None else acc + t
        o_ref[0] = acc.astype(o_ref.dtype)

    in_specs = (
        [pl.BlockSpec((1, TN, a.shape[-1]), lambda b, i, j: (b, i, 0)) for a in x1_aug]
        + [pl.BlockSpec((1, a.shape[1], TM), lambda b, i, j: (b, 0, j)) for a in x2_aug_t]
    )

    out = pl.pallas_call(
        body,
        out_shape=jax.ShapeDtypeStruct((B, Np, Mp), out_dtype),
        grid=grid,
        in_specs=in_specs,
        out_specs=pl.BlockSpec((1, TN, TM), lambda b, i, j: (b, i, j)),
        compiler_params=pltpu.CompilerParams(
            dimension_semantics=("parallel", "parallel", "parallel"),
            vmem_limit_bytes=32 * 1024 * 1024),   # fits TN=512/TM=1024 double-buffered + temps
    )(*x1_aug, *x2_aug_t)

    if Np != N or Mp != M:
        out = out[:, :N, :M]
    return out


# ----------------------------------------------------------------------------
# Kernel base class + concrete / composite kernels (module-semantics glue)
# ----------------------------------------------------------------------------
class Kernel:
    def __init__(self, has_lengthscale=False, ard_num_dims=None,
                 active_dims=None, batch_size=1):
        if active_dims is not None:
            active_dims = jnp.asarray(active_dims, dtype=jnp.int32)
        self.active_dims = active_dims
        self.ard_num_dims = ard_num_dims
        self.log_lengthscale = None
        if has_lengthscale:
            lengthscale_num_dims = 1 if ard_num_dims is None else ard_num_dims
            # torch.zeros(batch_size, 1, lengthscale_num_dims)
            self.log_lengthscale = jnp.zeros(
                (batch_size, 1, lengthscale_num_dims), jnp.float32)

    @property
    def lengthscale(self):
        if self.log_lengthscale is not None:
            return jnp.exp(self.log_lengthscale)
        return None

    def forward(self, x1, x2):
        raise NotImplementedError()

    def __call__(self, x1_, x2_=None):
        if self.active_dims is not None:
            x1 = jnp.take(x1_, self.active_dims, axis=-1)
            x2 = jnp.take(x2_, self.active_dims, axis=-1) if x2_ is not None else None
        else:
            x1, x2 = x1_, x2_
        if x2 is None:
            x2 = x1
        if x1.ndim == 1:
            x1 = x1[:, None]
        if x2.ndim == 1:
            x2 = x2[:, None]
        if x1.shape[-1] != x2.shape[-1]:
            raise RuntimeError("x1 and x2 must have the same number of dimensions!")
        # Eager evaluation (stands in for LazyEvaluatedKernelVariable.evaluate_kernel()).
        return self.forward(x1, x2)

    def __add__(self, other):
        return AdditiveKernel(self, other)

    def __mul__(self, other):
        return ProductKernel(self, other)


class RBFKernel(Kernel):
    """Concrete has_lengthscale=True kernel whose forward runs in Pallas."""

    def __init__(self, ard_num_dims=None, active_dims=None, batch_size=1):
        super().__init__(has_lengthscale=True, ard_num_dims=ard_num_dims,
                         active_dims=active_dims, batch_size=batch_size)

    def _scale(self, x1, x2):
        B = x1.shape[0]
        log_ls = self.log_lengthscale
        if log_ls.shape[0] not in (1, B):
            raise ValueError(
                "log_lengthscale batch size must be 1 or match the data batch size")
        # Multiply by exp(-log_ls)/sqrt(2): replaces the divide and folds the 0.5
        # of the RBF exponent, so the kernel only needs exp(-sqdist).
        scale = jnp.exp(-log_ls) * _SQRT_HALF           # (Lb, 1, Dl), broadcasts
        return x1 * scale, x2 * scale

    def _prepare(self, x1, x2):
        """Used by composite kernels: apply own active_dims, then lengthscale scaling."""
        if self.active_dims is not None:
            x1 = jnp.take(x1, self.active_dims, axis=-1)
            x2 = jnp.take(x2, self.active_dims, axis=-1)
        return self._scale(x1, x2)

    def forward(self, x1, x2):
        # active_dims already applied by __call__ for the standalone path.
        x1b, squeeze = _as_batched(x1)
        x2b, _ = _as_batched(x2)
        p1, p2 = self._scale(x1b, x2b)
        out = fused_rbf_covar([p1], [p2], combine="add")
        return out[0] if squeeze else out


class _CompositeKernel(Kernel):
    _combine = "add"

    def __init__(self, *kernels):
        super().__init__()
        self.kernels = list(kernels)

    def forward(self, x1, x2):
        x1b, squeeze = _as_batched(x1)
        x2b, _ = _as_batched(x2)
        fused1, fused2, other = [], [], []
        for k in self.kernels:
            if isinstance(k, RBFKernel):
                p1, p2 = k._prepare(x1b, x2b)   # sub-kernel applies its own active_dims
                fused1.append(p1)
                fused2.append(p2)
            else:
                # TODO(synk): non-RBF / nested sub-kernels fall back to separate
                # evaluation combined with jnp (XLA-fused elementwise), not Pallas-fused.
                other.append(k(x1b, x2b))
        res = None
        if fused1:
            res = fused_rbf_covar(fused1, fused2, combine=self._combine)
        for m in other:
            if res is None:
                res = m
            elif self._combine == "add":
                res = res + m
            else:
                res = res * m
        if res is None:
            if self._combine == "add":
                # Empty AdditiveKernel == ZeroLazyVariable -> zero covariance.
                res = jnp.zeros((x1b.shape[0], x1b.shape[1], x2b.shape[1]), jnp.float32)
            else:
                raise ValueError("ProductKernel requires at least one sub-kernel")
        return res[0] if squeeze else res


class AdditiveKernel(_CompositeKernel):
    _combine = "add"


class ProductKernel(_CompositeKernel):
    _combine = "mul"


# ----------------------------------------------------------------------------
# Demo / self-check
# ----------------------------------------------------------------------------
if __name__ == "__main__":
    key = jax.random.PRNGKey(0)
    B, N, D = 2, 16, 8
    x = jax.random.normal(key, (B, N, D), dtype=jnp.float32)

    # Deterministic parameter init (module __init__ gives zeros; perturb deterministically).
    k1 = RBFKernel(ard_num_dims=D)                     # ARD lengthscale, all dims
    k1.log_lengthscale = (0.1 * jnp.arange(D, dtype=jnp.float32)).reshape(1, 1, D)

    k2 = RBFKernel(active_dims=[0, 1, 2, 3])           # scalar lengthscale, first 4 dims
    k2.log_lengthscale = jnp.full((1, 1, 1), 0.2, dtype=jnp.float32)

    additive = k1 + k2                                 # AdditiveKernel
    product = k1 * k2                                  # ProductKernel

    K1 = k1(x)                      # standalone RBF      -> (B, N, N)
    K_add = additive(x)             # x2 defaults to x1   -> (B, N, N)
    K_prod = product(x, x)
    jax.block_until_ready((K1, K_add, K_prod))

    # Pure-JAX reference check.
    def ref_rbf(a, b, log_ls):
        ls = jnp.exp(log_ls)                           # (1, 1, Dl)
        a_, b_ = a / ls, b / ls
        d2 = jnp.sum((a_[:, :, None, :] - b_[:, None, :, :]) ** 2, axis=-1)
        return jnp.exp(-0.5 * d2)

    r1 = ref_rbf(x, x, k1.log_lengthscale)
    xs = x[..., :4]
    r2 = ref_rbf(xs, xs, k2.log_lengthscale)

    assert K1.shape == (B, N, N)
    assert K_add.shape == (B, N, N) and K_prod.shape == (B, N, N)
    assert jnp.allclose(K1, r1, atol=1e-5, rtol=1e-5)
    assert jnp.allclose(K_add, r1 + r2, atol=1e-5, rtol=1e-5)
    assert jnp.allclose(K_prod, r1 * r2, atol=1e-5, rtol=1e-5)
    assert bool(jnp.all(jnp.isfinite(K_add))) and bool(jnp.all(jnp.isfinite(K_prod)))

    print("KERNEL_OK")
</pallas_src>

<mosaic_0001>
module attributes {stable_mosaic.version = 11 : i64} {
  func.func @body(%arg0: i32, %arg1: i32, %arg2: i32, %arg3: memref<1x16x10xf32, #tpu.memory_space<vmem>>, %arg4: memref<1x10x128xf32, #tpu.memory_space<vmem>>, %arg5: memref<1x16x128xf32, #tpu.memory_space<vmem>>) attributes {dimension_semantics = [#tpu.dimension_semantics<parallel>, #tpu.dimension_semantics<parallel>, #tpu.dimension_semantics<parallel>], iteration_bounds = array<i64: 2, 1, 1>, scalar_prefetch = 0 : i64, scratch_operands = 0 : i64, tpu.core_type = #tpu.core_type<tc>, window_params = [{transform_indices = @transform_0, window_bounds = array<i64: 1, 16, 10>}, {transform_indices = @transform_1, window_bounds = array<i64: 1, 10, 128>}, {transform_indices = @transform_2, window_bounds = array<i64: 1, 16, 128>}]} {
    %c0 = arith.constant 0 : index
    %c0_0 = arith.constant 0 : index
    %c0_1 = arith.constant 0 : index
    %0 = vector.load %arg3[%c0, %c0_0, %c0_1] : memref<1x16x10xf32, #tpu.memory_space<vmem>>, vector<1x16x10xf32>
    %1 = vector.shape_cast %0 : vector<1x16x10xf32> to vector<16x10xf32>
    %c0_2 = arith.constant 0 : index
    %c0_3 = arith.constant 0 : index
    %c0_4 = arith.constant 0 : index
    %2 = vector.load %arg4[%c0_2, %c0_3, %c0_4] : memref<1x10x128xf32, #tpu.memory_space<vmem>>, vector<1x10x128xf32>
    %3 = vector.shape_cast %2 : vector<1x10x128xf32> to vector<10x128xf32>
    %cst = arith.constant dense<0.000000e+00> : vector<16x128xf32>
    %4 = tpu.matmul %1, %3, %cst {dimension_numbers = #tpu.dot_dimension_numbers<[1], [0], [0], [1], [0, 0, 1, 1], [], []>} : vector<16x10xf32>, vector<10x128xf32>, vector<16x128xf32> -> vector<16x128xf32>
    %cst_5 = arith.constant 0.000000e+00 : f32
    %5 = vector.broadcast %cst_5 : f32 to vector<16x128xf32>
    %6 = arith.minimumf %4, %5 : vector<16x128xf32>
    %7 = math.exp %6 : vector<16x128xf32>
    %c0_6 = arith.constant 0 : index
    %c0_7 = arith.constant 0 : index
    %c0_8 = arith.constant 0 : index
    %8 = vector.load %arg5[%c0_6, %c0_7, %c0_8] : memref<1x16x128xf32, #tpu.memory_space<vmem>>, vector<1x16x128xf32>
    %9 = vector.shape_cast %8 : vector<1x16x128xf32> to vector<16x128xf32>
    %10 = vector.shape_cast %7 : vector<16x128xf32> to vector<1x16x128xf32>
    tpu.vector_store %arg5[%c0_6, %c0_7, %c0_8], %10 {strides = array<i32>} : memref<1x16x128xf32, #tpu.memory_space<vmem>>, vector<1x16x128xf32>,
    return
  }
  func.func @transform_0(%arg0: i32, %arg1: i32, %arg2: i32) -> (i32, i32, i32) {
    %c0_i32 = arith.constant 0 : i32
    %c0_i32_0 = arith.constant 0 : i32
    return %arg0, %arg1, %c0_i32 : i32, i32, i32
  }
  func.func @transform_1(%arg0: i32, %arg1: i32, %arg2: i32) -> (i32, i32, i32) {
    %c0_i32 = arith.constant 0 : i32
    %c0_i32_0 = arith.constant 0 : i32
    return %arg0, %c0_i32, %arg2 : i32, i32, i32
  }
  func.func @transform_2(%arg0: i32, %arg1: i32, %arg2: i32) -> (i32, i32, i32) {
    %c0_i32 = arith.constant 0 : i32
    return %arg0, %arg1, %arg2 : i32, i32, i32
  }
}

</mosaic_0001>

<llo_original>
// kernel: tpu_custom_call.1
$region0: #{tpu_custom_call.1}
  #allocation0 [shape = 'u32[]', space=smem, size = 0x4, offset = 0x4, fixed_abs, tag = 'smem constant byte address 0x4 - core index']
  #allocation1 [shape = 'u32[144,128]{1,0:T(1,128)}', space=vmem, size = 0x12000, scoped, tag = 'internal scratch']
  %s0 = inlined_call_operand.vmem [shape: f32[2,16,10], index: 0, kind: input, shape index: {}]
  %s1 = inlined_call_operand.vmem [shape: f32[2,10,128], index: 1, kind: input, shape index: {}]
  %s2 = inlined_call_operand.hbm [shape: f32[2,16,128], index: 2, kind: output, shape index: {}]
  %s3 = sld [smem:[#allocation0]]
  $region41: #{tpu_custom_call.1} parent=0
    _
  %s5 = ssub.s32 1, %s3
  %s6 = scalar_select 0, %s5, %s3
  $region1: #{tpu_custom_call.1} parent=0
    #allocation2 [shape = 'u8[16384]{0}', space=vmem, size = 0x4000, scoped, tag = 'output window, operand 0']
    #allocation3 [shape = 's32[2]{0}', space=sflag, size = 0x8, scoped, tag = 'scoped memory for tpu_custom_call.1']
    %7 = vsyncpa [#allocation3], 0
    %s8 = scalar_lea.sflag [#allocation3], 1
    %9 = vsyncpa %s8, 0
    loop: start=0, step=1, limit=4
    $region2: #{tpu_custom_call.1} parent=1 // loop_pre_header
      _
    $region3: #{tpu_custom_call.1} parent=1 // loop_header
      %s11 = sphi 0, %s15
      %p12 = scmp.ge.s32.totalorder %s11, 4
      %s18 = sphi 0, %s37
      %s19 = sphi 0, %s33
      %s20 = sphi 0, %s29
      %s21 = sphi 0, %s18
      %s22 = sphi 0, %s19
      %s23 = sphi 0, %s20
      %s24 = sphi 0, %s21
      %s25 = sphi 0, %s22
      %s26 = sphi 0, %s23
      %s42 = sphi 0, %s44
      %s45 = sphi 0, %s42
      %s46 = sphi 0, %s45
      %s62 = sphi 0, %s46
      %s70 = sphi 0, %s72
      %s73 = sphi 0, %s70
      %s74 = sphi 0, %s73
      %s90 = sphi 0, %s74
      %s100 = sphi 0, %s102
      %s103 = sphi 0, %s100
      %s104 = sphi 0, %s103
      %s120 = sphi 0, %s104
    $region4: #{tpu_custom_call.1} parent=1 // loop_header_branch
      %14 = sbr.rel (%p12) target = $region8
    $region5: #{tpu_custom_call.1} parent=1 // loop_body
      %s16 = ssub.s32 %s11, 1
      %s17 = ssub.s32 %s11, 2
      %s27 = sadd.s32 1, %s20
      %p28 = scmp.ge.s32.totalorder %s27, 1
      %s29 = scalar_select %p28, 0, %s27
      %s30 = sadd.s32 1, %s19
      %s31 = scalar_select %p28, %s30, %s19
      %p32 = scmp.ge.s32.totalorder %s31, 1
      %s33 = scalar_select %p32, 0, %s31
      %s34 = sadd.s32 1, %s18
      %s35 = scalar_select %p32, %s34, %s18
      %p36 = scmp.ge.s32.totalorder %s35, 2
      %s37 = scalar_select %p36, 0, %s35
      %s38 = ssub.s32 %s18, %s37
      %s39 = ssub.s32 %s19, %s33
      %s40 = sor.u32 %s38, %s39
      %p41 = scmp.eq.s32.totalorder %s40, 0
      %s43 = sadd.s32 %s42, 1
      %s44 = scalar_select %p41, %s42, %s43
      %p47 = pneg %p41
      %p48 = scmp.eq.s32.totalorder %s11, 1
      %p49 = por %p47, %p48
      %p50 = scmp.ne.s32.totalorder %s42, %s45
      %p51 = scmp.eq.s32.totalorder %s11, 0
      %p52 = por %p50, %p51
      %p53 = scmp.ne.s32.totalorder %s42, %s45
      %p54 = scmp.eq.s32.totalorder %s16, 1
      %p55 = por %p53, %p54
      %p56 = scmp.ne.s32.totalorder %s45, %s46
      %p57 = scmp.eq.s32.totalorder %s16, 0
      %p58 = por %p56, %p57
      %p59 = scmp.ne.s32.totalorder %s45, %s46
      %p60 = scmp.eq.s32.totalorder %s17, 1
      %p61 = por %p59, %p60
      %p63 = scmp.ne.s32.totalorder %s46, %s62
      %p64 = scmp.eq.s32.totalorder %s17, 0
      %p65 = por %p63, %p64
      %s66 = ssub.s32 %s18, %s37
      %s67 = ssub.s32 %s20, %s29
      %s68 = sor.u32 %s66, %s67
      %p69 = scmp.eq.s32.totalorder %s68, 0
      %s71 = sadd.s32 %s70, 1
      %s72 = scalar_select %p69, %s70, %s71
      %p75 = pneg %p69
      %p76 = scmp.eq.s32.totalorder %s11, 1
      %p77 = por %p75, %p76
      %p78 = scmp.ne.s32.totalorder %s70, %s73
      %p79 = scmp.eq.s32.totalorder %s11, 0
      %p80 = por %p78, %p79
      %p81 = scmp.ne.s32.totalorder %s70, %s73
      %p82 = scmp.eq.s32.totalorder %s16, 1
      %p83 = por %p81, %p82
      %p84 = scmp.ne.s32.totalorder %s73, %s74
      %p85 = scmp.eq.s32.totalorder %s16, 0
      %p86 = por %p84, %p85
      %p87 = scmp.ne.s32.totalorder %s73, %s74
      %p88 = scmp.eq.s32.totalorder %s17, 1
      %p89 = por %p87, %p88
      %p91 = scmp.ne.s32.totalorder %s74, %s90
      %p92 = scmp.eq.s32.totalorder %s17, 0
      %p93 = por %p91, %p92
      %s94 = ssub.s32 %s18, %s37
      %s95 = ssub.s32 %s19, %s33
      %s96 = sor.u32 %s94, %s95
      %s97 = ssub.s32 %s20, %s29
      %s98 = sor.u32 %s96, %s97
      %p99 = scmp.eq.s32.totalorder %s98, 0
      %s101 = sadd.s32 %s100, 1
      %s102 = scalar_select %p99, %s100, %s101
      %p105 = pneg %p99
      %p106 = scmp.eq.s32.totalorder %s11, 1
      %p107 = por %p105, %p106
      %p108 = scmp.ne.s32.totalorder %s100, %s103
      %p109 = scmp.eq.s32.totalorder %s11, 0
      %p110 = por %p108, %p109
      %p111 = scmp.ne.s32.totalorder %s100, %s103
      %p112 = scmp.eq.s32.totalorder %s16, 1
      %p113 = por %p111, %p112
      %p114 = scmp.ne.s32.totalorder %s103, %s104
      %p115 = scmp.eq.s32.totalorder %s16, 0
      %p116 = por %p114, %p115
      %p117 = scmp.ne.s32.totalorder %s103, %s104
      %p118 = scmp.eq.s32.totalorder %s17, 1
      %p119 = por %p117, %p118
      %p121 = scmp.ne.s32.totalorder %s104, %s120
      %p122 = scmp.eq.s32.totalorder %s17, 0
      %p123 = por %p121, %p122
      %p124 = scmp.le.s32.totalorder 1, %s11
      %p125 = scmp.lt.s32.totalorder %s11, 3
      %p126 = pnand %p124, %p125
      %p127 = pneg %p126
      // Predicated region
      $region9: #{tpu_custom_call.1} parent=5 // pred_check
        _
      $region10: #{tpu_custom_call.1} parent=5 // pred_check_branch
        %129 = sbr.rel (%p126) target = $region12
      $region11: #{tpu_custom_call.1} parent=5 // pred_region
        %s130 = ssub.s32 %s11, 1
      $region12: #{tpu_custom_call.1} parent=5 // pred_fallthru
        _
      %p131 = scmp.lt.s32.totalorder %s11, 2
      // Predicated region
      $region13: #{tpu_custom_call.1} parent=5 // pred_check
        %p132 = pneg %p131
      $region14: #{tpu_custom_call.1} parent=5 // pred_check_branch
        %134 = sbr.rel (%p132) target = $region16
      $region15: #{tpu_custom_call.1} parent=5 // pred_region
        // Predicated region
        $region17: #{tpu_custom_call.1} parent=15 // pred_check
          %p135 = pneg %p52
        $region18: #{tpu_custom_call.1} parent=15 // pred_check_branch
          %137 = sbr.rel (%p135) target = $region20
        $region19: #{tpu_custom_call.1} parent=15 // pred_region
          %s138 = smul.u32 2, %s19
          %p139 = scmp.lt.s32.totalorder %s18, 1
          %s140 = scalar_select %p139, %s18, 1
          %p141 = scmp.lt.s32.totalorder %s138, 1
          %s142 = scalar_select %p141, %s138, 1
          %s143 = smul.addr %s140, 2
          %s144 = sadd.s32 %s142, %s143
          %s145 = smul.addr %s144, 8
          %s146 = scalar_lea.vmem %s0, %s145
          %s147 = smul.u32 2, %s19
        $region20: #{tpu_custom_call.1} parent=15 // pred_fallthru
          _
        // Predicated region
        $region21: #{tpu_custom_call.1} parent=15 // pred_check
          %p148 = pneg %p80
        $region22: #{tpu_custom_call.1} parent=15 // pred_check_branch
          %150 = sbr.rel (%p148) target = $region24
        $region23: #{tpu_custom_call.1} parent=15 // pred_region
          %p151 = scmp.lt.s32.totalorder %s18, 1
          %s152 = scalar_select %p151, %s18, 1
          %p153 = scmp.lt.s32.totalorder %s20, 0
          %s154 = scalar_select %p153, %s20, 0
          %s155 = smul.addr %s152, 2
          %s156 = sadd.s32 %s154, %s155
          %s157 = smul.addr %s156, 8
          %s158 = scalar_lea.vmem %s1, %s157
        $region24: #{tpu_custom_call.1} parent=15 // pred_fallthru
          _
      $region16: #{tpu_custom_call.1} parent=5 // pred_fallthru
        _
      %p159 = scmp.le.s32.totalorder 1, %s11
      %p160 = scmp.lt.s32.totalorder %s11, 3
      %p161 = pnand %p159, %p160
      %p162 = pneg %p161
      // Predicated region
      $region25: #{tpu_custom_call.1} parent=5 // pred_check
        _
      $region26: #{tpu_custom_call.1} parent=5 // pred_check_branch
        %164 = sbr.rel (%p161) target = $region28
      $region27: #{tpu_custom_call.1} parent=5 // pred_region
        %s165 = ssub.s32 %s11, 1
        %s166 = smul.u32 2, %s22
        %p167 = scmp.lt.s32.totalorder %s21, 1
        %s168 = scalar_select %p167, %s21, 1
        %p169 = scmp.lt.s32.totalorder %s166, 1
        %s170 = scalar_select %p169, %s166, 1
        %s171 = smul.addr %s168, 2
        %s172 = sadd.s32 %s170, %s171
        %s173 = smul.addr %s172, 8
        %s174 = scalar_lea.vmem %s0, %s173
        %p175 = pneg %p58
        %p176 = pneg %p55
        %p177 = scmp.lt.s32.totalorder %s21, 1
        %s178 = scalar_select %p177, %s21, 1
        %p179 = scmp.lt.s32.totalorder %s23, 0
        %s180 = scalar_select %p179, %s23, 0
        %s181 = smul.addr %s178, 2
        %s182 = sadd.s32 %s180, %s181
        %s183 = smul.addr %s182, 8
        %s184 = scalar_lea.vmem %s1, %s183
        %p185 = pneg %p86
        %p186 = pneg %p83
        %p187 = pneg %p116
        %p188 = pneg %p113
        %s189 = sand.u32 %s103, 1
        %s190 = scalar_lea.sflag [#allocation3], %s189
        %s191 = sand.u32 %s103, 1
        %s192 = smul.addr %s191, 16
        %s193 = scalar_lea.vmem [#allocation2], %s192
        %s194 = smul.u32 2, %s22
        %p195 = scmp.lt.s32.totalorder %s21, 1
        %s196 = scalar_select %p195, %s21, 1
        %p197 = scmp.lt.s32.totalorder %s194, 1
        %s198 = scalar_select %p197, %s194, 1
        %s199 = smul.addr %s196, 2
        %s200 = sadd.s32 %s198, %s199
        %s201 = smul.addr %s200, 8
        %s202 = scalar_lea.vmem %s0, %s201
        %s203 = smul.u32 2, %s22
        %p204 = scmp.lt.s32.totalorder %s21, 1
        %s205 = scalar_select %p204, %s21, 1
        %p206 = scmp.lt.s32.totalorder %s23, 0
        %s207 = scalar_select %p206, %s23, 0
        %s208 = smul.addr %s205, 2
        %s209 = sadd.s32 %s207, %s208
        %s210 = smul.addr %s209, 8
        %s211 = scalar_lea.vmem %s1, %s210
        %s212 = smul.u32 2, %s22
        %v213 = vld [vmem:[%s202] sm:$0xff]
        %v214 = vld [vmem:[%s202 + $0x8] sm:$0xff]
        %v215 = vld [vmem:[%s211] sm:$0xff]
        %v216 = vld [vmem:[%s211 + $0x8] sm:$0x3]
        %vm217 = vcmask 80896
        %v219 = vsel %vm217, %v213, 0
        %v222 = vsel %vm217, %v214, 0
        %vm224 = vcmask 1041408
        %v226 = vsel %vm224, %v216, 0
        %228 = vmatprep.subr.mxu0 0.0
        %229 = vmatpush1.msra.mxu0 %v215
        %230 = vmatprep.subr.mxu0 0.0
        %231 = vmatpush1.msra.mxu0 %v226
        %232 = vmatprep.subr.mxu0 0.0
        %233 = vmatpush1.msra.mxu0 0.0
        %234 = vmatprep.subr.mxu0 0.0
        %235 = vmatpush1.msra.mxu0 0.0
        %236 = vmatprep.subr.mxu0 0.0
        %237 = vmatpush1.msra.mxu0 0.0
        %238 = vmatprep.subr.mxu0 0.0
        %239 = vmatpush1.msra.mxu0 0.0
        %240 = vmatprep.subr.mxu0 0.0
        %241 = vmatpush1.msra.mxu0 0.0
        %242 = vmatprep.subr.mxu0 0.0
        %243 = vmatpush1.msra.mxu0 0.0
        %244 = vmatprep.subr.mxu0 0.0
        %245 = vmatpush1.msra.mxu0 0.0
        %246 = vmatprep.subr.mxu0 0.0
        %247 = vmatpush1.msra.mxu0 0.0
        %248 = vmatprep.subr.mxu0 0.0
        %249 = vmatpush1.msra.mxu0 0.0
        %250 = vmatprep.subr.mxu0 0.0
        %251 = vmatpush1.msra.mxu0 0.0
        %252 = vmatprep.subr.mxu0 0.0
        %253 = vmatpush1.msra.mxu0 0.0
        %254 = vmatprep.subr.mxu0 0.0
        %255 = vmatpush1.msra.mxu0 0.0
        %256 = vmatprep.subr.mxu0 0.0
        %257 = vmatpush1.msra.mxu0 0.0
        %258 = vmatprep.subr.mxu0 0.0
        %259 = vmatpush1.msra.mxu0 0.0
        %260 = vmatprep.subr.mxu0 0.0
        %261 = vmatpush1.msra.mxu0 0.0
        %262 = vmatprep.subr.mxu0 0.0
        %263 = vmatpush1.msra.mxu0 0.0
        %264 = vmatprep.subr.mxu0 0.0
        %265 = vmatpush1.msra.mxu0 0.0
        %266 = vmatprep.subr.mxu0 0.0
        %267 = vmatpush1.msra.mxu0 0.0
        %268 = vmatprep.subr.mxu0 0.0
        %269 = vmatpush1.msra.mxu0 0.0
        %270 = vmatprep.subr.mxu0 0.0
        %271 = vmatpush1.msra.mxu0 0.0
        %272 = vmatprep.subr.mxu0 0.0
        %273 = vmatpush1.msra.mxu0 0.0
        %274 = vmatprep.subr.mxu0 0.0
        %275 = vmatpush1.msra.mxu0 0.0
        %276 = vmatprep.subr.mxu0 0.0
        %277 = vmatpush1.msra.mxu0 0.0
        %278 = vmatprep.subr.mxu0 0.0
        %279 = vmatpush1.msra.mxu0 0.0
        %280 = vmatprep.subr.mxu0 0.0
        %281 = vmatpush1.msra.mxu0 0.0
        %282 = vmatprep.subr.mxu0 0.0
        %283 = vmatpush1.msra.mxu0 0.0
        %284 = vmatprep.subr.mxu0 0.0
        %285 = vmatpush1.msra.mxu0 0.0
        %286 = vmatprep.subr.mxu0 0.0
        %287 = vmatpush1.msra.mxu0 0.0
        %288 = vmatprep.subr.mxu0 0.0
        %289 = vmatpush1.msra.mxu0 0.0
        %290 = vmatprep.subr.mxu0 0.0
        %291 = vmatpush1.msra.mxu0 0.0
        %292 = vmatprep.mubr.f32.mxu0 0.0
        %293 = vmatmul.mubr.f32.gmra.mrb[0].mxu0 %v219
        %v294 = vpop.f32.mrb[0].mxu0
        %v295 = vadd.f32 0.0, %v294
        %v296 = vpop.f32.mrb[0].mxu0
        %297 = vmatprep.mubr.f32.mxu0 0.0
        %298 = vmatmul.mubr.f32.gmra.mrb[0].mxu0 %v222
        %v299 = vpop.f32.mrb[0].mxu0
        %v300 = vadd.f32 0.0, %v299
        %v301 = vpop.f32.mrb[0].mxu0
        %302 = vdwg.mxu0
        %v303 = vmin.f32 %v295, 0.0
        %v304 = vmin.f32 %v300, 0.0
        %v305 = vmul.f32 %v303, 1.442695
        %v306 = vpow.pop %v305
        %v307 = vmul.f32 %v304, 1.442695
        %v308 = vpow.pop %v307
        %309 = vst [vmem:[%s193] sm:$0xff] %v306
        %310 = vst [vmem:[%s193 + $0x8] sm:$0xff] %v308
        %s311 = sand.u32 %s103, 1
        %s312 = scalar_lea.sflag [#allocation3], %s311
        %s313 = sand.u32 %s103, 1
        %s314 = smul.addr %s313, 16
        %s315 = scalar_lea.vmem [#allocation2], %s314
        // Predicated region
        $region29: #{tpu_custom_call.1} parent=27 // pred_check
          %p316 = pneg %p113
        $region30: #{tpu_custom_call.1} parent=27 // pred_check_branch
          %318 = sbr.rel (%p316) target = $region32
        $region31: #{tpu_custom_call.1} parent=27 // pred_region
          %s319 = smul.u32 2, %s22
          %s321 = ssub.s32 256, 256
          %322 = vsyncadd %s312, %s321
          %s323 = sadd.s32 %s23, %s319
          %s324 = smul.addr %s21, 2
          %s325 = sadd.s32 %s323, %s324
          %s326 = smul.addr %s325, 128
          %s327 = scalar_lea.hbm %s2, %s326
          %s328 = sshll.u32 %s315, 4
          %s329 = int_to_ptr.vmem [resolvable:$true] %s328
          %334 = dma.vmem_to_hbm [thread:$0]  %s329, 256, %s327, %s312, 128, 128, 8
        $region32: #{tpu_custom_call.1} parent=27 // pred_fallthru
          _
      $region28: #{tpu_custom_call.1} parent=5 // pred_fallthru
        _
      %p335 = scmp.le.s32.totalorder 2, %s11
      // Predicated region
      $region33: #{tpu_custom_call.1} parent=5 // pred_check
        %p336 = pneg %p335
      $region34: #{tpu_custom_call.1} parent=5 // pred_check_branch
        %338 = sbr.rel (%p336) target = $region36
      $region35: #{tpu_custom_call.1} parent=5 // pred_region
        %s339 = ssub.s32 %s11, 2
        // Predicated region
        $region37: #{tpu_custom_call.1} parent=35 // pred_check
          %p340 = pneg %p119
        $region38: #{tpu_custom_call.1} parent=35 // pred_check_branch
          %342 = sbr.rel (%p340) target = $region40
        $region39: #{tpu_custom_call.1} parent=35 // pred_region
          %s343 = sand.u32 %s104, 1
          %s344 = scalar_lea.sflag [#allocation3], %s343
          %s345 = sand.u32 %s104, 1
          %s346 = smul.addr %s345, 16
          %s347 = scalar_lea.vmem [#allocation2], %s346
          %348 = dma.done %s344, 256
        $region40: #{tpu_custom_call.1} parent=35 // pred_fallthru
          _
      $region36: #{tpu_custom_call.1} parent=5 // pred_fallthru
        _
    $region6: #{tpu_custom_call.1} parent=1 // loop_footer
      %s15 = sadd.s32 1, %s11
    $region7: #{tpu_custom_call.1} parent=1 // loop_footer_branch
      %10 = sbr.rel target = $region3
    $region8: #{tpu_custom_call.1} parent=1 // loop_exit
      _
    %349 = vsyncpa [#allocation3], 1
    %s350 = scalar_lea.sflag [#allocation3], 1
    %351 = vsyncpa %s350, 1

</llo_original>
